<compile_context>
chip_gen: v7x
topology: tpu7x:2x2x1
jax: 0.10.0
libtpu: 0.0.40
codegen_flags: <defaults>
</compile_context>

<pallas_src>
import jax
import jax.numpy as jnp
from jax.experimental import pallas as pl
from jax.experimental.pallas import tpu as pltpu


def _round_up(v, m):
    return ((v + m - 1) // m) * m


def _gcn_kernel(x_ref, adj_ref, w_ref, b_ref, o_ref, support_ref):
    # support = x @ W, computed once per batch element (first row tile only),
    # kept resident in VMEM scratch for all adj row tiles of this batch element.
    @pl.when(pl.program_id(1) == 0)
    def _():
        s = jnp.dot(x_ref[0], w_ref[...], preferred_element_type=jnp.float32)
        support_ref[...] = s.astype(support_ref.dtype)

    # out_tile = adj_row_tile @ support + bias   (f32 accumulation on the MXU)
    out = jnp.dot(adj_ref[...], support_ref[...],
                  preferred_element_type=jnp.float32)
    o_ref[0] = (out + b_ref[...]).astype(o_ref.dtype)


def gcn_forward(x, adj, weight, bias, *, compute_dtype=jnp.bfloat16,
                row_tile=256):
    """Fused GCN layer: adj @ (x @ weight) + bias.

    x:      (N, F_in) or (B, N, F_in) float32
    adj:    (N, N) float32 (shared across the batch, as in STMGCN)
    weight: (F_in, F_out) float32
    bias:   (F_out,) float32
    returns (N, F_out) or (B, N, F_out) float32
    """
    squeeze = (x.ndim == 2)
    if squeeze:
        x = x[None]
    B, N, f_in = x.shape
    f_out = weight.shape[1]

    # Tile / padding sizes. tm multiple of 8 (sublane), f_out padded to 128
    # so the output slab is lane-dense (unmasked stores).
    if N <= row_tile:
        tm = _round_up(N, 8)
        n_pad = tm
    else:
        tm = row_tile
        n_pad = _round_up(N, tm)
    f_out_pad = _round_up(f_out, 128)
    n_row_tiles = n_pad // tm

    # Host-side prep: pad + cast to bf16 (f32 accumulation inside the kernel).
    xp = jnp.pad(x, ((0, 0), (0, n_pad - N), (0, 0))).astype(compute_dtype)
    adjp = jnp.pad(adj, ((0, n_pad - N), (0, n_pad - N))).astype(compute_dtype)
    wp = jnp.pad(weight, ((0, 0), (0, f_out_pad - f_out))).astype(compute_dtype)
    bp = jnp.pad(bias, (0, f_out_pad - f_out)).reshape(1, f_out_pad).astype(jnp.float32)

    itemsize = jnp.dtype(compute_dtype).itemsize
    flops = B * (2 * n_pad * f_in * f_out_pad + 2 * n_pad * n_pad * f_out_pad)
    bytes_accessed = (xp.size * itemsize
                      + B * adjp.size * itemsize
                      + wp.size * itemsize
                      + bp.size * 4
                      + B * n_pad * f_out_pad * 4)
    cost = pl.CostEstimate(flops=flops, transcendentals=0,
                           bytes_accessed=bytes_accessed)

    # VMEM estimate: double-buffered adj row tile + x tile + W + out tile
    # + resident support scratch.  Clamp so we never exceed v7x's 64 MiB.
    vmem_est = (2 * tm * n_pad * itemsize
                + 2 * n_pad * f_in * itemsize
                + 2 * f_in * f_out_pad * itemsize
                + 2 * tm * f_out_pad * 4
                + n_pad * f_out_pad * itemsize
                + (1 << 20))
    vmem_limit = int(min(max(2 * vmem_est, 32 << 20), 64 << 20))

    out = pl.pallas_call(
        _gcn_kernel,
        out_shape=jax.ShapeDtypeStruct((B, n_pad, f_out_pad), jnp.float32),
        grid_spec=pltpu.PrefetchScalarGridSpec(
            num_scalar_prefetch=0,
            grid=(B, n_row_tiles),
            in_specs=[
                pl.BlockSpec((1, n_pad, f_in), lambda b, i: (b, 0, 0)),     # x
                pl.BlockSpec((tm, n_pad), lambda b, i: (i, 0)),             # adj row tile
                pl.BlockSpec((f_in, f_out_pad), lambda b, i: (0, 0)),       # W
                pl.BlockSpec((1, f_out_pad), lambda b, i: (0, 0)),          # bias
            ],
            out_specs=pl.BlockSpec((1, tm, f_out_pad), lambda b, i: (b, i, 0)),
            scratch_shapes=[pltpu.VMEM((n_pad, f_out_pad), compute_dtype)],
        ),
        compiler_params=pltpu.CompilerParams(
            dimension_semantics=("parallel", "arbitrary"),
            vmem_limit_bytes=vmem_limit,
        ),
        cost_estimate=cost,
    )(xp, adjp, wp, bp)

    out = out[:, :N, :f_out]
    if squeeze:
        out = out[0]
    return out


def gcn_reference(x, adj, weight, bias, compute_dtype=jnp.bfloat16):
    """Reference with the same bf16-input / f32-accumulate numerics as the kernel."""
    xc = x.astype(compute_dtype)
    ac = adj.astype(compute_dtype)
    wc = weight.astype(compute_dtype)
    support = jnp.einsum('bnf,fo->bno', xc, wc,
                         preferred_element_type=jnp.float32).astype(compute_dtype)
    out = jnp.einsum('nm,bmo->bno', ac, support,
                     preferred_element_type=jnp.float32)
    return out + bias[None, None, :]


if __name__ == "__main__":
    key = jax.random.PRNGKey(0)
    k_x, k_adj, k_w, k_b = jax.random.split(key, 4)

    # Small shapes consistent with GCN(nfeat, out), batched over STMGCN time-steps.
    B = 8         # time-steps / graphs processed in ONE pallas_call
    N = 16        # graph nodes
    nfeat = 32    # input feature dim
    nout = 16     # output feature dim

    x = jax.random.normal(k_x, (B, N, nfeat), dtype=jnp.float32)

    # Symmetric normalized-ish adjacency (deterministic, synthetic), shared across batch.
    a = jax.random.uniform(k_adj, (N, N), dtype=jnp.float32)
    a = (a + a.T) * 0.5 + jnp.eye(N, dtype=jnp.float32)
    adj = a / jnp.sum(a, axis=1, keepdims=True)

    # Param init mimicking GraphConvolution.reset_parameters: U(-stdv, stdv), stdv=1/sqrt(out).
    stdv = 1.0 / jnp.sqrt(jnp.float32(nout))
    weight = jax.random.uniform(k_w, (nfeat, nout), jnp.float32, -stdv, stdv)
    bias = jax.random.uniform(k_b, (nout,), jnp.float32, -stdv, stdv)

    out = jax.block_until_ready(gcn_forward(x, adj, weight, bias))
    ref = gcn_reference(x, adj, weight, bias)

    assert out.shape == (B, N, nout)
    assert jnp.allclose(out, ref, atol=1e-2, rtol=1e-2), "batched mismatch vs reference"

    # Single-graph path — matches the original GCN.forward(x, adj) signature.
    out1 = jax.block_until_ready(gcn_forward(x[0], adj, weight, bias))
    assert out1.shape == (N, nout)
    assert jnp.allclose(out1, ref[0], atol=1e-2, rtol=1e-2), "single-graph mismatch"

    print("KERNEL_OK")
</pallas_src>

<mosaic_0001>
module attributes {stable_mosaic.version = 11 : i64} {
  func.func @_gcn_kernel(%arg0: i32, %arg1: i32, %arg2: memref<1x16x32xbf16, #tpu.memory_space<vmem>>, %arg3: memref<16x16xbf16, #tpu.memory_space<vmem>>, %arg4: memref<32x128xbf16, #tpu.memory_space<vmem>>, %arg5: memref<1x128xf32, #tpu.memory_space<vmem>>, %arg6: memref<1x16x128xf32, #tpu.memory_space<vmem>>, %arg7: memref<16x128xbf16, #tpu.memory_space<vmem>>) attributes {dimension_semantics = [#tpu.dimension_semantics<parallel>, #tpu.dimension_semantics<arbitrary>], iteration_bounds = array<i64: 8, 1>, scalar_prefetch = 0 : i64, scratch_operands = 1 : i64, tpu.core_type = #tpu.core_type<tc>, window_params = [{transform_indices = @transform_0, window_bounds = array<i64: 1, 16, 32>}, {transform_indices = @transform_1, window_bounds = array<i64: 16, 16>}, {pipeline_mode = #tpu.pipeline_mode<synchronous>, transform_indices = @transform_2, window_bounds = array<i64: 32, 128>}, {pipeline_mode = #tpu.pipeline_mode<synchronous>, transform_indices = @transform_3, window_bounds = array<i64: 1, 128>}, {transform_indices = @transform_4, window_bounds = array<i64: 1, 16, 128>}]} {
    %c0_i32 = arith.constant 0 : i32
    %0 = arith.cmpi eq, %arg1, %c0_i32 : i32
    %1 = arith.extui %0 : i1 to i32
    %c0_i32_0 = arith.constant 0 : i32
    %2 = arith.cmpi ne, %1, %c0_i32_0 : i32
    scf.if %2 {
      %c0_9 = arith.constant 0 : index
      %c0_10 = arith.constant 0 : index
      %c0_11 = arith.constant 0 : index
      %12 = vector.load %arg2[%c0_9, %c0_10, %c0_11] : memref<1x16x32xbf16, #tpu.memory_space<vmem>>, vector<1x16x32xbf16>
      %13 = vector.shape_cast %12 : vector<1x16x32xbf16> to vector<16x32xbf16>
      %c0_12 = arith.constant 0 : index
      %c0_13 = arith.constant 0 : index
      %14 = vector.load %arg4[%c0_12, %c0_13] : memref<32x128xbf16, #tpu.memory_space<vmem>>, vector<32x128xbf16>
      %cst_14 = arith.constant dense<0.000000e+00> : vector<16x128xf32>
      %15 = tpu.matmul %13, %14, %cst_14 {dimension_numbers = #tpu.dot_dimension_numbers<[1], [0], [0], [1], [0, 0, 1, 1], [], []>} : vector<16x32xbf16>, vector<32x128xbf16>, vector<16x128xf32> -> vector<16x128xf32>
      %16 = arith.truncf %15 : vector<16x128xf32> to vector<16x128xbf16>
      %c0_15 = arith.constant 0 : index
      %c0_16 = arith.constant 0 : index
      %17 = vector.load %arg7[%c0_15, %c0_16] : memref<16x128xbf16, #tpu.memory_space<vmem>>, vector<16x128xbf16>
      tpu.vector_store %arg7[%c0_15, %c0_16], %16 {strides = array<i32>} : memref<16x128xbf16, #tpu.memory_space<vmem>>, vector<16x128xbf16>,
    } else {
    }
    %c0 = arith.constant 0 : index
    %c0_1 = arith.constant 0 : index
    %3 = vector.load %arg3[%c0, %c0_1] : memref<16x16xbf16, #tpu.memory_space<vmem>>, vector<16x16xbf16>
    %c0_2 = arith.constant 0 : index
    %c0_3 = arith.constant 0 : index
    %4 = vector.load %arg7[%c0_2, %c0_3] : memref<16x128xbf16, #tpu.memory_space<vmem>>, vector<16x128xbf16>
    %cst = arith.constant dense<0.000000e+00> : vector<16x128xf32>
    %5 = tpu.matmul %3, %4, %cst {dimension_numbers = #tpu.dot_dimension_numbers<[1], [0], [0], [1], [0, 0, 1, 1], [], []>} : vector<16x16xbf16>, vector<16x128xbf16>, vector<16x128xf32> -> vector<16x128xf32>
    %c0_4 = arith.constant 0 : index
    %c0_5 = arith.constant 0 : index
    %6 = vector.load %arg5[%c0_4, %c0_5] : memref<1x128xf32, #tpu.memory_space<vmem>>, vector<1x128xf32>
    %7 = vector.broadcast %6 : vector<1x128xf32> to vector<16x128xf32>
    %8 = arith.addf %5, %7 : vector<16x128xf32>
    %c0_6 = arith.constant 0 : index
    %c0_7 = arith.constant 0 : index
    %c0_8 = arith.constant 0 : index
    %9 = vector.load %arg6[%c0_6, %c0_7, %c0_8] : memref<1x16x128xf32, #tpu.memory_space<vmem>>, vector<1x16x128xf32>
    %10 = vector.shape_cast %9 : vector<1x16x128xf32> to vector<16x128xf32>
    %11 = vector.shape_cast %8 : vector<16x128xf32> to vector<1x16x128xf32>
    tpu.vector_store %arg6[%c0_6, %c0_7, %c0_8], %11 {strides = array<i32>} : memref<1x16x128xf32, #tpu.memory_space<vmem>>, vector<1x16x128xf32>,
    return
  }
  func.func @transform_0(%arg0: i32, %arg1: i32) -> (i32, i32, i32) {
    %c0_i32 = arith.constant 0 : i32
    %c0_i32_0 = arith.constant 0 : i32
    %c0_i32_1 = arith.constant 0 : i32
    return %arg0, %c0_i32, %c0_i32_0 : i32, i32, i32
  }
  func.func @transform_1(%arg0: i32, %arg1: i32) -> (i32, i32) {
    %c0_i32 = arith.constant 0 : i32
    %c0_i32_0 = arith.constant 0 : i32
    return %arg1, %c0_i32 : i32, i32
  }
  func.func @transform_2(%arg0: i32, %arg1: i32) -> (i32, i32) {
    %c0_i32 = arith.constant 0 : i32
    %c0_i32_0 = arith.constant 0 : i32
    %c0_i32_1 = arith.constant 0 : i32
    return %c0_i32, %c0_i32_0 : i32, i32
  }
  func.func @transform_3(%arg0: i32, %arg1: i32) -> (i32, i32) {
    %c0_i32 = arith.constant 0 : i32
    %c0_i32_0 = arith.constant 0 : i32
    %c0_i32_1 = arith.constant 0 : i32
    return %c0_i32, %c0_i32_0 : i32, i32
  }
  func.func @transform_4(%arg0: i32, %arg1: i32) -> (i32, i32, i32) {
    %c0_i32 = arith.constant 0 : i32
    %c0_i32_0 = arith.constant 0 : i32
    return %arg0, %arg1, %c0_i32 : i32, i32, i32
  }
}

</mosaic_0001>

<llo_original>
// kernel: tpu_custom_call.1
$region0: #{tpu_custom_call.1}
  #allocation0 [shape = 'u32[]', space=smem, size = 0x4, offset = 0x4, fixed_abs, tag = 'smem constant byte address 0x4 - core index']
  #allocation1 [shape = 'u32[144,128]{1,0:T(1,128)}', space=vmem, size = 0x12000, scoped, tag = 'internal scratch']
  #allocation2 [shape = 'bf16[16,128]{1,0:T(16,128)(2,1)}', space=vmem, size = 0x1000, scoped, tag = 'scratch operand']
  %s0 = inlined_call_operand.hbm [shape: bf16[8,16,32], index: 0, kind: input, shape index: {}]
  %s1 = inlined_call_operand.hbm [shape: bf16[16,16], index: 1, kind: input, shape index: {}]
  %s2 = inlined_call_operand.hbm [shape: bf16[32,128], index: 2, kind: input, shape index: {}]
  %s3 = inlined_call_operand.vmem [shape: f32[1,128], index: 3, kind: input, shape index: {}]
  %s4 = inlined_call_operand.hbm [shape: f32[8,16,128], index: 4, kind: output, shape index: {}]
  %s5 = sld [smem:[#allocation0]]
  $region65: #{tpu_custom_call.1} parent=0
    _
  %s7 = ssub.s32 1, %s5
  %s8 = scalar_select 0, %s7, %s5
  $region1: #{tpu_custom_call.1} parent=0
    #allocation3 [shape = 'u8[8192]{0}', space=vmem, size = 0x2000, scoped, tag = 'input window, operand 0']
    #allocation4 [shape = 's32[2]{0}', space=sflag, size = 0x8, scoped, tag = 'scoped memory for tpu_custom_call.1']
    #allocation5 [shape = 's32[2]{0}', space=sflag, size = 0x8, scoped, tag = 'scoped memory for tpu_custom_call.1']
    #allocation6 [shape = 'u8[4096]{0}', space=vmem, size = 0x1000, scoped, tag = 'input window, operand 1, single buffered']
    #allocation7 [shape = 's32[1]{0}', space=sflag, size = 0x4, scoped, tag = 'scoped memory for tpu_custom_call.1']
    #allocation8 [shape = 'u8[8192]{0}', space=vmem, size = 0x2000, scoped, tag = 'input window, operand 2, single buffered']
    #allocation9 [shape = 'u8[16384]{0}', space=vmem, size = 0x4000, scoped, tag = 'output window, operand 0']
    %9 = vsyncpa [#allocation4], 0
    %s10 = scalar_lea.sflag [#allocation4], 1
    %11 = vsyncpa %s10, 0
    %12 = vsyncpa [#allocation7], 0
    %13 = vsyncpa [#allocation5], 0
    %s14 = scalar_lea.sflag [#allocation5], 1
    %15 = vsyncpa %s14, 0
    loop: start=0, step=1, limit=10
    $region2: #{tpu_custom_call.1} parent=1 // loop_pre_header
      _
    $region3: #{tpu_custom_call.1} parent=1 // loop_header
      %s17 = sphi 0, %s21
      %p18 = scmp.ge.s32.totalorder %s17, 10
      %s24 = sphi 0, %s36
      %s25 = sphi 0, %s32
      %s26 = sphi 0, %s24
      %s27 = sphi 0, %s25
      %s28 = sphi 0, %s26
      %s29 = sphi 0, %s27
      %s39 = sphi 0, %s41
      %s42 = sphi 0, %s39
      %s43 = sphi 0, %s42
      %s59 = sphi 0, %s43
      %s65 = sphi 0, %s67
      %s68 = sphi 0, %s65
      %s69 = sphi 0, %s68
      %s85 = sphi 0, %s69
      %s89 = sphi 0, %s89
      %s91 = sphi 0, %s89
      %s92 = sphi 0, %s91
      %s106 = sphi 0, %s92
      %s110 = sphi 0, %s110
      %s112 = sphi 0, %s110
      %s113 = sphi 0, %s112
      %s127 = sphi 0, %s113
      %s135 = sphi 0, %s137
      %s138 = sphi 0, %s135
      %s139 = sphi 0, %s138
      %s155 = sphi 0, %s139
    $region4: #{tpu_custom_call.1} parent=1 // loop_header_branch
      %20 = sbr.rel (%p18) target = $region8
    $region5: #{tpu_custom_call.1} parent=1 // loop_body
      %s22 = ssub.s32 %s17, 1
      %s23 = ssub.s32 %s17, 2
      %s30 = sadd.s32 1, %s25
      %p31 = scmp.ge.s32.totalorder %s30, 1
      %s32 = scalar_select %p31, 0, %s30
      %s33 = sadd.s32 1, %s24
      %s34 = scalar_select %p31, %s33, %s24
      %p35 = scmp.ge.s32.totalorder %s34, 8
      %s36 = scalar_select %p35, 0, %s34
      %s37 = ssub.s32 %s24, %s36
      %p38 = scmp.eq.s32.totalorder %s37, 0
      %s40 = sadd.s32 %s39, 1
      %s41 = scalar_select %p38, %s39, %s40
      %p44 = pneg %p38
      %p45 = scmp.eq.s32.totalorder %s17, 7
      %p46 = por %p44, %p45
      %p47 = scmp.ne.s32.totalorder %s39, %s42
      %p48 = scmp.eq.s32.totalorder %s17, 0
      %p49 = por %p47, %p48
      %p50 = scmp.ne.s32.totalorder %s39, %s42
      %p51 = scmp.eq.s32.totalorder %s22, 7
      %p52 = por %p50, %p51
      %p53 = scmp.ne.s32.totalorder %s42, %s43
      %p54 = scmp.eq.s32.totalorder %s22, 0
      %p55 = por %p53, %p54
      %p56 = scmp.ne.s32.totalorder %s42, %s43
      %p57 = scmp.eq.s32.totalorder %s23, 7
      %p58 = por %p56, %p57
      %p60 = scmp.ne.s32.totalorder %s43, %s59
      %p61 = scmp.eq.s32.totalorder %s23, 0
      %p62 = por %p60, %p61
      %s63 = ssub.s32 %s25, %s32
      %p64 = scmp.eq.s32.totalorder %s63, 0
      %s66 = sadd.s32 %s65, 1
      %s67 = scalar_select %p64, %s65, %s66
      %p70 = pneg %p64
      %p71 = scmp.eq.s32.totalorder %s17, 7
      %p72 = por %p70, %p71
      %p73 = scmp.ne.s32.totalorder %s65, %s68
      %p74 = scmp.eq.s32.totalorder %s17, 0
      %p75 = por %p73, %p74
      %p76 = scmp.ne.s32.totalorder %s65, %s68
      %p77 = scmp.eq.s32.totalorder %s22, 7
      %p78 = por %p76, %p77
      %p79 = scmp.ne.s32.totalorder %s68, %s69
      %p80 = scmp.eq.s32.totalorder %s22, 0
      %p81 = por %p79, %p80
      %p82 = scmp.ne.s32.totalorder %s68, %s69
      %p83 = scmp.eq.s32.totalorder %s23, 7
      %p84 = por %p82, %p83
      %p86 = scmp.ne.s32.totalorder %s69, %s85
      %p87 = scmp.eq.s32.totalorder %s23, 0
      %p88 = por %p86, %p87
      %s90 = sadd.s32 %s89, 1
      %p93 = scmp.eq.s32.totalorder %s17, 7
      %p94 = scmp.ne.s32.totalorder %s89, %s91
      %p95 = scmp.eq.s32.totalorder %s17, 0
      %p96 = por %p94, %p95
      %p97 = scmp.ne.s32.totalorder %s89, %s91
      %p98 = scmp.eq.s32.totalorder %s22, 7
      %p99 = por %p97, %p98
      %p100 = scmp.ne.s32.totalorder %s91, %s92
      %p101 = scmp.eq.s32.totalorder %s22, 0
      %p102 = por %p100, %p101
      %p103 = scmp.ne.s32.totalorder %s91, %s92
      %p104 = scmp.eq.s32.totalorder %s23, 7
      %p105 = por %p103, %p104
      %p107 = scmp.ne.s32.totalorder %s92, %s106
      %p108 = scmp.eq.s32.totalorder %s23, 0
      %p109 = por %p107, %p108
      %s111 = sadd.s32 %s110, 1
      %p114 = scmp.eq.s32.totalorder %s17, 7
      %p115 = scmp.ne.s32.totalorder %s110, %s112
      %p116 = scmp.eq.s32.totalorder %s17, 0
      %p117 = por %p115, %p116
      %p118 = scmp.ne.s32.totalorder %s110, %s112
      %p119 = scmp.eq.s32.totalorder %s22, 7
      %p120 = por %p118, %p119
      %p121 = scmp.ne.s32.totalorder %s112, %s113
      %p122 = scmp.eq.s32.totalorder %s22, 0
      %p123 = por %p121, %p122
      %p124 = scmp.ne.s32.totalorder %s112, %s113
      %p125 = scmp.eq.s32.totalorder %s23, 7
      %p126 = por %p124, %p125
      %p128 = scmp.ne.s32.totalorder %s113, %s127
      %p129 = scmp.eq.s32.totalorder %s23, 0
      %p130 = por %p128, %p129
      %s131 = ssub.s32 %s24, %s36
      %s132 = ssub.s32 %s25, %s32
      %s133 = sor.u32 %s131, %s132
      %p134 = scmp.eq.s32.totalorder %s133, 0
      %s136 = sadd.s32 %s135, 1
      %s137 = scalar_select %p134, %s135, %s136
      %p140 = pneg %p134
      %p141 = scmp.eq.s32.totalorder %s17, 7
      %p142 = por %p140, %p141
      %p143 = scmp.ne.s32.totalorder %s135, %s138
      %p144 = scmp.eq.s32.totalorder %s17, 0
      %p145 = por %p143, %p144
      %p146 = scmp.ne.s32.totalorder %s135, %s138
      %p147 = scmp.eq.s32.totalorder %s22, 7
      %p148 = por %p146, %p147
      %p149 = scmp.ne.s32.totalorder %s138, %s139
      %p150 = scmp.eq.s32.totalorder %s22, 0
      %p151 = por %p149, %p150
      %p152 = scmp.ne.s32.totalorder %s138, %s139
      %p153 = scmp.eq.s32.totalorder %s23, 7
      %p154 = por %p152, %p153
      %p156 = scmp.ne.s32.totalorder %s139, %s155
      %p157 = scmp.eq.s32.totalorder %s23, 0
      %p158 = por %p156, %p157
      %p159 = scmp.le.s32.totalorder 1, %s17
      %p160 = scmp.lt.s32.totalorder %s17, 9
      %p161 = pnand %p159, %p160
      %p162 = pneg %p161
      // Predicated region
      $region9: #{tpu_custom_call.1} parent=5 // pred_check
        _
      $region10: #{tpu_custom_call.1} parent=5 // pred_check_branch
        %164 = sbr.rel (%p161) target = $region12
      $region11: #{tpu_custom_call.1} parent=5 // pred_region
        %s165 = ssub.s32 %s17, 1
        // Predicated region
        $region13: #{tpu_custom_call.1} parent=11 // pred_check
          %p166 = pneg %p81
        $region14: #{tpu_custom_call.1} parent=11 // pred_check_branch
          %168 = sbr.rel (%p166) target = $region16
        $region15: #{tpu_custom_call.1} parent=11 // pred_region
          %s169 = smul.u32 2, %s27
          %s171 = ssub.s32 128, 128
          %172 = vsyncadd [#allocation7], %s171
          %s173 = smul.addr %s169, 64
          %s174 = scalar_lea.hbm %s1, %s173
          %s175 = sshll.u32 [#allocation6], 4
          %s176 = int_to_ptr.vmem [resolvable:$true] %s175
          %181 = dma.hbm_to_vmem [thread:$0]  %s174, 128, %s176, [#allocation7], 64, 64, 4
        $region16: #{tpu_custom_call.1} parent=11 // pred_fallthru
          _
        // Predicated region
        $region17: #{tpu_custom_call.1} parent=11 // pred_check
          %p182 = pneg %p102
        $region18: #{tpu_custom_call.1} parent=11 // pred_check_branch
          %184 = sbr.rel (%p182) target = $region20
        $region19: #{tpu_custom_call.1} parent=11 // pred_region
          %s186 = ssub.s32 256, 256
          %187 = vsyncadd [#allocation7], %s186
          %s188 = sshll.u32 [#allocation8], 4
          %s189 = int_to_ptr.vmem [resolvable:$true] %s188
          %194 = dma.hbm_to_vmem [thread:$0]  %s2, 256, %s189, [#allocation7], 64, 64, 4
        $region20: #{tpu_custom_call.1} parent=11 // pred_fallthru
          _
        // Predicated region
        $region21: #{tpu_custom_call.1} parent=11 // pred_check
          %p195 = pneg %p123
        $region22: #{tpu_custom_call.1} parent=11 // pred_check_branch
          %197 = sbr.rel (%p195) target = $region24
        $region23: #{tpu_custom_call.1} parent=11 // pred_region
          _
        $region24: #{tpu_custom_call.1} parent=11 // pred_fallthru
          _
      $region12: #{tpu_custom_call.1} parent=5 // pred_fallthru
        _
      %p198 = scmp.lt.s32.totalorder %s17, 8
      // Predicated region
      $region25: #{tpu_custom_call.1} parent=5 // pred_check
        %p199 = pneg %p198
      $region26: #{tpu_custom_call.1} parent=5 // pred_check_branch
        %201 = sbr.rel (%p199) target = $region28
      $region27: #{tpu_custom_call.1} parent=5 // pred_region
        // Predicated region
        $region29: #{tpu_custom_call.1} parent=27 // pred_check
          %p202 = pneg %p49
        $region30: #{tpu_custom_call.1} parent=27 // pred_check_branch
          %204 = sbr.rel (%p202) target = $region32
        $region31: #{tpu_custom_call.1} parent=27 // pred_region
          %s205 = sand.u32 %s39, 1
          %s206 = scalar_lea.sflag [#allocation4], %s205
          %s207 = sand.u32 %s39, 1
          %s208 = smul.addr %s207, 8
          %s209 = scalar_lea.vmem [#allocation3], %s208
          %s211 = ssub.s32 128, 128
          %212 = vsyncadd %s206, %s211
          %s213 = smul.addr %s24, 2
          %s214 = smul.addr %s213, 64
          %s215 = scalar_lea.hbm %s0, %s214
          %s216 = sshll.u32 %s209, 4
          %s217 = int_to_ptr.vmem [resolvable:$true] %s216
          %222 = dma.hbm_to_vmem [thread:$0]  %s215, 128, %s217, %s206, 64, 64, 4
        $region32: #{tpu_custom_call.1} parent=27 // pred_fallthru
          _
      $region28: #{tpu_custom_call.1} parent=5 // pred_fallthru
        _
      %p223 = scmp.le.s32.totalorder 1, %s17
      %p224 = scmp.lt.s32.totalorder %s17, 9
      %p225 = pnand %p223, %p224
      %p226 = pneg %p225
      // Predicated region
      $region33: #{tpu_custom_call.1} parent=5 // pred_check
        _
      $region34: #{tpu_custom_call.1} parent=5 // pred_check_branch
        %228 = sbr.rel (%p225) target = $region36
      $region35: #{tpu_custom_call.1} parent=5 // pred_region
        %s229 = ssub.s32 %s17, 1
        %s230 = sand.u32 %s42, 1
        %s231 = scalar_lea.sflag [#allocation4], %s230
        %s232 = sand.u32 %s42, 1
        %s233 = smul.addr %s232, 8
        %s234 = scalar_lea.vmem [#allocation3], %s233
        // Predicated region
        $region37: #{tpu_custom_call.1} parent=35 // pred_check
          %p235 = pneg %p55
        $region38: #{tpu_custom_call.1} parent=35 // pred_check_branch
          %237 = sbr.rel (%p235) target = $region40
        $region39: #{tpu_custom_call.1} parent=35 // pred_region
          %238 = dma.done %s231, 128
        $region40: #{tpu_custom_call.1} parent=35 // pred_fallthru
          _
        // Predicated region
        $region41: #{tpu_custom_call.1} parent=35 // pred_check
          %p239 = pneg %p81
        $region42: #{tpu_custom_call.1} parent=35 // pred_check_branch
          %241 = sbr.rel (%p239) target = $region44
        $region43: #{tpu_custom_call.1} parent=35 // pred_region
          %242 = dma.done [#allocation7], 128
        $region44: #{tpu_custom_call.1} parent=35 // pred_fallthru
          _
        // Predicated region
        $region45: #{tpu_custom_call.1} parent=35 // pred_check
          %p243 = pneg %p102
        $region46: #{tpu_custom_call.1} parent=35 // pred_check_branch
          %245 = sbr.rel (%p243) target = $region48
        $region47: #{tpu_custom_call.1} parent=35 // pred_region
          %246 = dma.done [#allocation7], 256
        $region48: #{tpu_custom_call.1} parent=35 // pred_fallthru
          _
        %s247 = sand.u32 %s42, 1
        %s248 = scalar_lea.sflag [#allocation4], %s247
        %s249 = sand.u32 %s42, 1
        %s250 = smul.addr %s249, 8
        %s251 = scalar_lea.vmem [#allocation3], %s250
        %p252 = pneg %p55
        %p253 = pneg %p52
        %p254 = pneg %p81
        %p255 = pneg %p78
        %p256 = pneg %p102
        %p257 = pneg %p99
        %p258 = pneg %p123
        %p259 = pneg %p120
        %p260 = pneg %p151
        %p261 = pneg %p148
        %s262 = sand.u32 %s138, 1
        %s263 = scalar_lea.sflag [#allocation5], %s262
        %s264 = sand.u32 %s138, 1
        %s265 = smul.addr %s264, 16
        %s266 = scalar_lea.vmem [#allocation9], %s265
        %s267 = smul.u32 2, %s27
        %s268 = smul.u32 2, %s27
        %p270 = scmp.eq.s32.totalorder %s27, 0
        // Predicated region
        $region49: #{tpu_custom_call.1} parent=35 // pred_check
          %p271 = pneg %p270
        $region50: #{tpu_custom_call.1} parent=35 // pred_check_branch
          %273 = sbr.rel (%p271) target = $region52
        $region51: #{tpu_custom_call.1} parent=35 // pred_region
          %v274 = vld [vmem:[%s234] sm:$0xf]
          %v275 = vld [vmem:[%s234 + $0x4] sm:$0xf]
          %v276 = vld [vmem:[#allocation8] sm:$0xf]
          %v277 = vld [vmem:[#allocation8 + $0x4] sm:$0xf]
          %v278 = vld [vmem:[#allocation8 + $0x8] sm:$0xf]
          %v279 = vld [vmem:[#allocation8 + $0xc] sm:$0xf]
          %v282 = vunpack.c.l.b16 %v274
          %v283 = vunpack.c.l.b16 %v275
          %v284 = vpack.c.b16 %v283, %v282
          %v289 = vunpack.c.l.b16 %v276
          %v290 = vunpack.c.l.b16 %v277
          %v291 = vunpack.c.l.b16 %v278
          %v292 = vunpack.c.l.b16 %v279
          %v293 = vpack.c.b16 %v290, %v289
          %v294 = vpack.c.b16 %v292, %v291
          %vm297 = vcmask 261120
          %v299 = vsel %vm297, %v284, 0
          %301 = vmatprep.subr.bf16.mxu0 0
          %302 = vmatpush1.bf16.msra.mxu0 %v293
          %303 = vmatprep.subr.bf16.mxu0 0
          %304 = vmatpush1.bf16.msra.mxu0 %v294
          %305 = vmatprep.subr.bf16.mxu0 0
          %306 = vmatpush1.bf16.msra.mxu0 0
          %307 = vmatprep.subr.bf16.mxu0 0
          %308 = vmatpush1.bf16.msra.mxu0 0
          %309 = vmatprep.subr.bf16.mxu0 0
          %310 = vmatpush1.bf16.msra.mxu0 0
          %311 = vmatprep.subr.bf16.mxu0 0
          %312 = vmatpush1.bf16.msra.mxu0 0
          %313 = vmatprep.subr.bf16.mxu0 0
          %314 = vmatpush1.bf16.msra.mxu0 0
          %315 = vmatprep.subr.bf16.mxu0 0
          %316 = vmatpush1.bf16.msra.mxu0 0
          %317 = vmatprep.subr.bf16.mxu0 0
          %318 = vmatpush1.bf16.msra.mxu0 0
          %319 = vmatprep.subr.bf16.mxu0 0
          %320 = vmatpush1.bf16.msra.mxu0 0
          %321 = vmatprep.subr.bf16.mxu0 0
          %322 = vmatpush1.bf16.msra.mxu0 0
          %323 = vmatprep.subr.bf16.mxu0 0
          %324 = vmatpush1.bf16.msra.mxu0 0
          %325 = vmatprep.subr.bf16.mxu0 0
          %326 = vmatpush1.bf16.msra.mxu0 0
          %327 = vmatprep.subr.bf16.mxu0 0
          %328 = vmatpush1.bf16.msra.mxu0 0
          %329 = vmatprep.subr.bf16.mxu0 0
          %330 = vmatpush1.bf16.msra.mxu0 0
          %331 = vmatprep.subr.bf16.mxu0 0
          %332 = vmatpush1.bf16.msra.mxu0 0
          %333 = vmatprep.mubr.bf16.mxu0 0
          %334 = vmatmul.mubr.bf16.gmra.mrb[0].mxu0 %v299
          %v335 = vpop.f32.mrb[0].mxu0
          %v336 = vadd.f32 0.0, %v335
          %v337 = vpop.f32.mrb[0].mxu0
          %v338 = vpop.f32.mrb[0].mxu0
          %v339 = vadd.f32 0.0, %v338
          %v340 = vpop.f32.mrb[0].mxu0
          %341 = vdwg.mxu0
          %v342 = vpack.c.bf16 %v339, %v336
          %343 = vst [vmem:[#allocation2] sm:$0xff] %v342
        $region52: #{tpu_custom_call.1} parent=35 // pred_fallthru
          _
        %v344 = vld [vmem:[#allocation6] sm:$0xf]
        %v345 = vld [vmem:[#allocation6 + $0x4] sm:$0xf]
        %v346 = vld [vmem:[#allocation2] sm:$0xff]
        %v347 = vld [vmem:[%s3] sm:$0x1]
        %v349 = vlaneseq
        %v350 = vshrl.u32 %v349, 7
        %v351 = vsub.s32 0, %v350
        %v352 = vrot.slane %v347, %v351
        %v356 = vunpack.c.l.b16 %v344
        %v357 = vunpack.c.l.b16 %v345
        %v358 = vpack.c.b16 %v357, %v356
        %vm359 = vcmask 130048
        %v361 = vsel %vm359, %v358, 0
        %363 = vmatprep.subr.bf16.mxu0 0
        %364 = vmatpush1.bf16.msra.mxu0 %v346
        %365 = vmatprep.subr.bf16.mxu0 0
        %366 = vmatpush1.bf16.msra.mxu0 0
        %367 = vmatprep.subr.bf16.mxu0 0
        %368 = vmatpush1.bf16.msra.mxu0 0
        %369 = vmatprep.subr.bf16.mxu0 0
        %370 = vmatpush1.bf16.msra.mxu0 0
        %371 = vmatprep.subr.bf16.mxu0 0
        %372 = vmatpush1.bf16.msra.mxu0 0
        %373 = vmatprep.subr.bf16.mxu0 0
        %374 = vmatpush1.bf16.msra.mxu0 0
        %375 = vmatprep.subr.bf16.mxu0 0
        %376 = vmatpush1.bf16.msra.mxu0 0
        %377 = vmatprep.subr.bf16.mxu0 0
        %378 = vmatpush1.bf16.msra.mxu0 0
        %379 = vmatprep.subr.bf16.mxu0 0
        %380 = vmatpush1.bf16.msra.mxu0 0
        %381 = vmatprep.subr.bf16.mxu0 0
        %382 = vmatpush1.bf16.msra.mxu0 0
        %383 = vmatprep.subr.bf16.mxu0 0
        %384 = vmatpush1.bf16.msra.mxu0 0
        %385 = vmatprep.subr.bf16.mxu0 0
        %386 = vmatpush1.bf16.msra.mxu0 0
        %387 = vmatprep.subr.bf16.mxu0 0
        %388 = vmatpush1.bf16.msra.mxu0 0
        %389 = vmatprep.subr.bf16.mxu0 0
        %390 = vmatpush1.bf16.msra.mxu0 0
        %391 = vmatprep.subr.bf16.mxu0 0
        %392 = vmatpush1.bf16.msra.mxu0 0
        %393 = vmatprep.subr.bf16.mxu0 0
        %394 = vmatpush1.bf16.msra.mxu0 0
        %395 = vmatprep.mubr.bf16.mxu0 0
        %396 = vmatmul.mubr.bf16.gmra.mrb[0].mxu0 %v361
        %v397 = vpop.f32.mrb[0].mxu0
        %v398 = vadd.f32 %v352, %v397
        %v399 = vpop.f32.mrb[0].mxu0
        %v400 = vpop.f32.mrb[0].mxu0
        %v401 = vadd.f32 %v352, %v400
        %v402 = vpop.f32.mrb[0].mxu0
        %403 = vdwg.mxu0
        %404 = vst [vmem:[%s266] sm:$0xff] %v398
        %405 = vst [vmem:[%s266 + $0x8] sm:$0xff] %v401
        %s406 = sand.u32 %s138, 1
        %s407 = scalar_lea.sflag [#allocation5], %s406
        %s408 = sand.u32 %s138, 1
        %s409 = smul.addr %s408, 16
        %s410 = scalar_lea.vmem [#allocation9], %s409
        // Predicated region
        $region53: #{tpu_custom_call.1} parent=35 // pred_check
          %p411 = pneg %p148
        $region54: #{tpu_custom_call.1} parent=35 // pred_check_branch
          %413 = sbr.rel (%p411) target = $region56
        $region55: #{tpu_custom_call.1} parent=35 // pred_region
          %s414 = smul.u32 2, %s27
          %s416 = ssub.s32 256, 256
          %417 = vsyncadd %s407, %s416
          %s418 = smul.addr %s26, 2
          %s419 = sadd.s32 %s414, %s418
          %s420 = smul.addr %s419, 128
          %s421 = scalar_lea.hbm %s4, %s420
          %s422 = sshll.u32 %s410, 4
          %s423 = int_to_ptr.vmem [resolvable:$true] %s422
          %428 = dma.vmem_to_hbm [thread:$0]  %s423, 256, %s421, %s407, 128, 128, 8
        $region56: #{tpu_custom_call.1} parent=35 // pred_fallthru
          _
      $region36: #{tpu_custom_call.1} parent=5 // pred_fallthru
        _
      %p429 = scmp.le.s32.totalorder 2, %s17
      // Predicated region
      $region57: #{tpu_custom_call.1} parent=5 // pred_check
        %p430 = pneg %p429
      $region58: #{tpu_custom_call.1} parent=5 // pred_check_branch
        %432 = sbr.rel (%p430) target = $region60
      $region59: #{tpu_custom_call.1} parent=5 // pred_region
        %s433 = ssub.s32 %s17, 2
        // Predicated region
        $region61: #{tpu_custom_call.1} parent=59 // pred_check
          %p434 = pneg %p154
        $region62: #{tpu_custom_call.1} parent=59 // pred_check_branch
          %436 = sbr.rel (%p434) target = $region64
        $region63: #{tpu_custom_call.1} parent=59 // pred_region
          %s437 = sand.u32 %s139, 1
          %s438 = scalar_lea.sflag [#allocation5], %s437
          %s439 = sand.u32 %s139, 1
          %s440 = smul.addr %s439, 16
          %s441 = scalar_lea.vmem [#allocation9], %s440
          %442 = dma.done %s438, 256
        $region64: #{tpu_custom_call.1} parent=59 // pred_fallthru
          _
      $region60: #{tpu_custom_call.1} parent=5 // pred_fallthru
        _
    $region6: #{tpu_custom_call.1} parent=1 // loop_footer
      %s21 = sadd.s32 1, %s17
    $region7: #{tpu_custom_call.1} parent=1 // loop_footer_branch
      %16 = sbr.rel target = $region3
    $region8: #{tpu_custom_call.1} parent=1 // loop_exit
      _
    %443 = vsyncpa [#allocation4], 1
    %s444 = scalar_lea.sflag [#allocation4], 1
    %445 = vsyncpa %s444, 1
    %446 = vsyncpa [#allocation7], 1
    %447 = vsyncpa [#allocation5], 1
    %s448 = scalar_lea.sflag [#allocation5], 1
    %449 = vsyncpa %s448, 1

</llo_original>
